<compile_context>
chip_gen: v5e
topology: v5e:2x2
jax: 0.10.0
libtpu: 0.0.40
codegen_flags: <defaults>
</compile_context>

<pallas_src>
import functools

import numpy as np
import jax
import jax.numpy as jnp
from jax import lax
from jax.experimental import pallas as pl
from jax.experimental.pallas import tpu as pltpu

_BF16 = jnp.bfloat16
_VMEM_LIMIT = 32 * 1024 * 1024


# ----------------------------------------------------------------------------
# Pallas kernels
# ----------------------------------------------------------------------------
def _mm_kernel(a_ref, b_ref, shift_ref, o_ref, *, relu):
    # o = act(a @ b + shift)   (a: [R,K] bf16, b: [K,tn] bf16, shift: [R,1] f32)
    acc = jnp.dot(a_ref[...], b_ref[...], preferred_element_type=jnp.float32)
    y = acc + shift_ref[...]
    if relu:
        y = jnp.maximum(y, 0.0)
    o_ref[...] = y.astype(o_ref.dtype)


def _maxpool9_kernel(x_ref, o_ref):
    # x_ref: [9, CB, tcol] window taps; o = max over the 9 taps.
    m = x_ref[0]
    for t in range(1, 9):
        m = jnp.maximum(m, x_ref[t])
    o_ref[...] = m


def _tap_conv_kernel(x_ref, w_ref, b_ref, s_ref, o_ref, *, taps, relu):
    # 3x3 conv via shift matrices: out = act(sum_t w[t] @ (x @ S[t]) + b)
    x = x_ref[...]
    cout = w_ref.shape[1]
    ncol = s_ref.shape[2]
    acc = jnp.zeros((cout, ncol), jnp.float32) + b_ref[...]
    for t in range(taps):
        tapped = jnp.dot(x, s_ref[t], preferred_element_type=jnp.float32).astype(_BF16)
        acc = acc + jnp.dot(w_ref[t], tapped, preferred_element_type=jnp.float32)
    if relu:
        acc = jnp.maximum(acc, 0.0)
    o_ref[...] = acc.astype(o_ref.dtype)


def _bottleneck_kernel(x_ref, xr_ref, w1_ref, b1_ref, w2_ref, b2_ref, s_ref,
                       w3_ref, b3_ref, o_ref):
    # Fused bottleneck with identity residual: all intermediates stay in VMEM.
    x = x_ref[...]
    h1 = jnp.dot(w1_ref[...], x, preferred_element_type=jnp.float32) + b1_ref[...]
    h1 = jnp.maximum(h1, 0.0).astype(_BF16)
    p = w2_ref.shape[1]
    ncol = s_ref.shape[2]
    acc = jnp.zeros((p, ncol), jnp.float32) + b2_ref[...]
    for t in range(9):
        tapped = jnp.dot(h1, s_ref[t], preferred_element_type=jnp.float32).astype(_BF16)
        acc = acc + jnp.dot(w2_ref[t], tapped, preferred_element_type=jnp.float32)
    h2 = jnp.maximum(acc, 0.0).astype(_BF16)
    y = jnp.dot(w3_ref[...], h2, preferred_element_type=jnp.float32) + b3_ref[...]
    y = y + xr_ref[...].astype(jnp.float32)
    o_ref[...] = jnp.maximum(y, 0.0).astype(o_ref.dtype)


def _bottleneck_ds_kernel(x_ref, d_ref, wd_ref, bd_ref, w1_ref, b1_ref, w2_ref,
                          b2_ref, s_ref, w3_ref, b3_ref, o_ref):
    # Fused bottleneck with projection shortcut (1x1 stride-s conv + BN on x).
    x = x_ref[...]
    xd = jnp.dot(x, d_ref[...], preferred_element_type=jnp.float32).astype(_BF16)
    res = jnp.dot(wd_ref[...], xd, preferred_element_type=jnp.float32) + bd_ref[...]
    h1 = jnp.dot(w1_ref[...], x, preferred_element_type=jnp.float32) + b1_ref[...]
    h1 = jnp.maximum(h1, 0.0).astype(_BF16)
    p = w2_ref.shape[1]
    ncol = s_ref.shape[2]
    acc = jnp.zeros((p, ncol), jnp.float32) + b2_ref[...]
    for t in range(9):
        tapped = jnp.dot(h1, s_ref[t], preferred_element_type=jnp.float32).astype(_BF16)
        acc = acc + jnp.dot(w2_ref[t], tapped, preferred_element_type=jnp.float32)
    h2 = jnp.maximum(acc, 0.0).astype(_BF16)
    y = jnp.dot(w3_ref[...], h2, preferred_element_type=jnp.float32) + b3_ref[...]
    y = y + res
    o_ref[...] = jnp.maximum(y, 0.0).astype(o_ref.dtype)


def _ppm_kernel(x_ref, wst_ref, bst_ref, wbx_ref, wbs_ref, bb_ref,
                pk0, pk1, pk2, pk3, uk0, uk1, uk2, uk3, o_ref):
    # Whole Pyramid Pooling Module in one kernel:
    #   out = relu( Wb_x @ x + sum_s Wb_s @ upsample_s(relu(Wst_s @ pool_s(x) + b_s)) + bb )
    # pool_s / upsample_s are right-multiplications by precomputed kron matrices.
    x = x_ref[...]
    acc = jnp.dot(wbx_ref[...], x, preferred_element_type=jnp.float32) + bb_ref[...]
    pks = (pk0, pk1, pk2, pk3)
    uks = (uk0, uk1, uk2, uk3)
    for s in range(4):
        pooled = jnp.dot(x, pks[s][...], preferred_element_type=jnp.float32)
        h = jnp.dot(wst_ref[s], pooled.astype(_BF16),
                    preferred_element_type=jnp.float32) + bst_ref[s]
        h = jnp.maximum(h, 0.0).astype(_BF16)
        up = jnp.dot(h, uks[s][...], preferred_element_type=jnp.float32).astype(_BF16)
        acc = acc + jnp.dot(wbs_ref[s], up, preferred_element_type=jnp.float32)
    o_ref[...] = jnp.maximum(acc, 0.0).astype(o_ref.dtype)


def _cls_resize_kernel(h_ref, w_ref, b_ref, u_ref, o_ref):
    # Fused 1x1 classifier conv (+bias) and bilinear resize to the input size.
    t = jnp.dot(w_ref[...], h_ref[...], preferred_element_type=jnp.float32) + b_ref[...]
    o_ref[...] = jnp.dot(t.astype(_BF16), u_ref[...],
                         preferred_element_type=jnp.float32).astype(o_ref.dtype)


# ----------------------------------------------------------------------------
# Generic fused matmul (only the 7x7 stem conv uses it now)
# ----------------------------------------------------------------------------
def _pick_col_tile(R, K, ncols):
    # Prefer >=2 lane-dense column tiles (keeps both v7x TensorCores busy) while
    # staying under a conservative VMEM footprint budget.
    budget = 20 * 1024 * 1024
    for tn in (1024, 512, 256, 128):
        if ncols % tn == 0 and ncols // tn >= 2:
            fp = 2 * K * tn * 2 + R * K * 2 + 2 * R * tn * 2 + R * tn * 4
            if fp <= budget:
                return tn
    if ncols <= 2048:
        return ncols
    return -1  # fall back to a padded 512-lane tile


def fused_matmul(a, b, shift, relu=False):
    """out[R, N] = act(a[R,K] @ b[K,N] + shift[R,1])  (bf16 MXU, f32 accumulation)."""
    a = a.astype(_BF16)
    b = b.astype(_BF16)
    R, K = a.shape
    ncols = b.shape[1]
    shift2 = shift.reshape(R, 1).astype(jnp.float32)

    tn = _pick_col_tile(R, K, ncols)
    padded = 0
    if tn == -1:
        tn = 512
        padded = (-ncols) % tn
        b = jnp.pad(b, ((0, 0), (0, padded)))
    n_total = ncols + padded
    grid = (n_total // tn,)

    out = pl.pallas_call(
        functools.partial(_mm_kernel, relu=relu),
        out_shape=jax.ShapeDtypeStruct((R, n_total), _BF16),
        grid=grid,
        in_specs=[pl.BlockSpec((R, K), lambda j: (0, 0)),     # weight stays resident
                  pl.BlockSpec((K, tn), lambda j: (0, j)),
                  pl.BlockSpec((R, 1), lambda j: (0, 0))],
        out_specs=pl.BlockSpec((R, tn), lambda j: (0, j)),
        compiler_params=pltpu.CompilerParams(
            dimension_semantics=("parallel",),
            vmem_limit_bytes=_VMEM_LIMIT),
    )(a, b, shift2)
    return out[:, :ncols] if padded else out


# ----------------------------------------------------------------------------
# layer0 building blocks (activations in CNHW layout: [C, B, H, W])
# ----------------------------------------------------------------------------
def conv2d_bn_act_im2col(x, wt, shift, k, stride, pad, relu):
    """7x7 stem conv.  x: [Cin,B,H,W] bf16; wt: [Cout, k*k*Cin] (BN-scale folded)."""
    C, B, H, W = x.shape
    cout = wt.shape[0]
    OH = (H + 2 * pad - k) // stride + 1
    OW = (W + 2 * pad - k) // stride + 1
    xp = jnp.pad(x, ((0, 0), (0, 0), (pad, pad), (pad, pad)))
    taps = []
    for kh in range(k):
        for kw in range(k):
            taps.append(lax.slice(
                xp, (0, 0, kh, kw),
                (C, B, kh + stride * (OH - 1) + 1, kw + stride * (OW - 1) + 1),
                (1, 1, stride, stride)))
    # TODO(synk): the one-off 7x7 stem conv still stages a 49-tap im2col through HBM;
    # a fully in-kernel windowed accumulation needs doubly-strided VMEM reads.
    cols = jnp.stack(taps, axis=0).reshape(k * k * C, B * OH * OW)
    out = fused_matmul(wt, cols, shift, relu=relu)
    return out.reshape(cout, B, OH, OW)


def max_pool_3x3_s2_p1(x):
    """nn.MaxPool2d(kernel_size=3, stride=2, padding=1) on CNHW."""
    C, B, H, W = x.shape
    OH = (H + 2 - 3) // 2 + 1
    OW = (W + 2 - 3) // 2 + 1
    neg = float(jnp.finfo(x.dtype).min)
    xp = jnp.pad(x, ((0, 0), (0, 0), (1, 1), (1, 1)), constant_values=neg)
    taps = []
    for kh in range(3):
        for kw in range(3):
            taps.append(lax.slice(
                xp, (0, 0, kh, kw),
                (C, B, kh + 2 * (OH - 1) + 1, kw + 2 * (OW - 1) + 1),
                (1, 1, 2, 2)))
    CB, HW = C * B, OH * OW
    # TODO(synk): taps (output-sized) are still staged through HBM; in-kernel
    # windowing would need doubly-strided VMEM slices.
    p = jnp.stack(taps, axis=0).reshape(9, CB, HW)
    tcol = HW if (HW <= 2048 or HW % 512) else 512      # lane-dense tiles
    out = pl.pallas_call(
        _maxpool9_kernel,
        out_shape=jax.ShapeDtypeStruct((CB, HW), x.dtype),
        grid=(HW // tcol,),
        in_specs=[pl.BlockSpec((9, CB, tcol), lambda i: (0, 0, i))],
        out_specs=pl.BlockSpec((CB, tcol), lambda i: (0, i)),
        compiler_params=pltpu.CompilerParams(dimension_semantics=("parallel",)),
    )(p)
    return out.reshape(C, B, OH, OW)


# ----------------------------------------------------------------------------
# Geometry matrices (0/1 shift / stride-select / pooling / bilinear), bf16-exact
# ----------------------------------------------------------------------------
def _conv3x3_shift(B, H, W, stride):
    OH = (H + 2 - 3) // stride + 1
    OW = (W + 2 - 3) // stride + 1
    S = np.zeros((9, B * H * W, B * OH * OW), np.float32)
    for kh in range(3):
        for kw in range(3):
            t = kh * 3 + kw
            for b in range(B):
                for oh in range(OH):
                    ih = oh * stride + kh - 1
                    if ih < 0 or ih >= H:
                        continue
                    for ow in range(OW):
                        iw = ow * stride + kw - 1
                        if iw < 0 or iw >= W:
                            continue
                        S[t, (b * H + ih) * W + iw, (b * OH + oh) * OW + ow] = 1.0
    return S, OH, OW


def _stride_sel(B, H, W, stride):
    OH = (H - 1) // stride + 1
    OW = (W - 1) // stride + 1
    D = np.zeros((B * H * W, B * OH * OW), np.float32)
    for b in range(B):
        for oh in range(OH):
            for ow in range(OW):
                D[(b * H + oh * stride) * W + ow * stride, (b * OH + oh) * OW + ow] = 1.0
    return D


class _GeomCache:
    """Caches per-geometry shift/select matrices so all blocks of a layer share them."""

    def __init__(self):
        self.shift = {}
        self.sel = {}

    def conv3x3(self, B, H, W, stride):
        key = (B, H, W, stride)
        if key not in self.shift:
            S, OH, OW = _conv3x3_shift(B, H, W, stride)
            self.shift[key] = (jnp.asarray(S, _BF16), OH, OW)
        return self.shift[key]

    def downsample(self, B, H, W, stride):
        key = (B, H, W, stride)
        if key not in self.sel:
            self.sel[key] = jnp.asarray(_stride_sel(B, H, W, stride), _BF16)
        return self.sel[key]


def _adaptive_pool_matrix(out_size, in_size):
    P = np.zeros((out_size, in_size), np.float32)
    for i in range(out_size):
        start = (i * in_size) // out_size
        end = -(-((i + 1) * in_size) // out_size)  # ceil
        P[i, start:end] = 1.0 / (end - start)
    return P


def _bilinear_matrix(out_size, in_size):
    # PyTorch F.interpolate(mode='bilinear', align_corners=False) per-axis weights.
    W = np.zeros((out_size, in_size), np.float32)
    if in_size == 1:
        W[:, 0] = 1.0
        return W
    scale = in_size / out_size
    for o in range(out_size):
        src = max((o + 0.5) * scale - 0.5, 0.0)
        i0 = min(int(np.floor(src)), in_size - 1)
        i1 = min(i0 + 1, in_size - 1)
        lam = src - i0
        W[o, i0] += 1.0 - lam
        W[o, i1] += lam
    return W


# ----------------------------------------------------------------------------
# Fused-block wrappers (activations flattened to [C, B*H*W] bf16)
# ----------------------------------------------------------------------------
def bottleneck_forward(x2, p, B, H, W, geom):
    stride = p["stride"]
    cin, M = x2.shape
    S, OH, OW = geom.conv3x3(B, H, W, stride)
    M2 = B * OH * OW
    P = p["w1t"].shape[0]
    C4 = p["w3t"].shape[0]

    tn = 256 if (M2 >= 512 and M2 % 256 == 0) else M2   # >=2 parallel steps when possible
    grid = (M2 // tn,)

    b1 = p["b1"].reshape(P, 1)
    b2 = p["b2"].reshape(P, 1)
    b3 = p["b3"].reshape(C4, 1)

    common_specs = [
        pl.BlockSpec((P, cin), lambda j: (0, 0)),       # w1
        pl.BlockSpec((P, 1), lambda j: (0, 0)),         # b1
        pl.BlockSpec((9, P, P), lambda j: (0, 0, 0)),   # w2 taps
        pl.BlockSpec((P, 1), lambda j: (0, 0)),         # b2
        pl.BlockSpec((9, M, tn), lambda j: (0, 0, j)),  # shift matrices (column-tiled)
        pl.BlockSpec((C4, P), lambda j: (0, 0)),        # w3
        pl.BlockSpec((C4, 1), lambda j: (0, 0)),        # b3
    ]
    common_args = [p["w1t"], b1, p["w2t"], b2, S, p["w3t"], b3]

    if "wdt" in p:
        D = geom.downsample(B, H, W, stride)
        kernel = _bottleneck_ds_kernel
        in_specs = [pl.BlockSpec((cin, M), lambda j: (0, 0)),    # x (full, conv path)
                    pl.BlockSpec((M, tn), lambda j: (0, j)),     # stride-select (cols)
                    pl.BlockSpec((C4, cin), lambda j: (0, 0)),   # wd
                    pl.BlockSpec((C4, 1), lambda j: (0, 0))      # bd
                    ] + common_specs
        args = [x2, D, p["wdt"], p["bd"].reshape(C4, 1)] + common_args
    else:
        kernel = _bottleneck_kernel
        in_specs = [pl.BlockSpec((cin, M), lambda j: (0, 0)),    # x (full, conv path)
                    pl.BlockSpec((cin, tn), lambda j: (0, j))    # x (residual columns)
                    ] + common_specs
        args = [x2, x2] + common_args

    out = pl.pallas_call(
        kernel,
        out_shape=jax.ShapeDtypeStruct((C4, M2), _BF16),
        grid=grid,
        in_specs=in_specs,
        out_specs=pl.BlockSpec((C4, tn), lambda j: (0, j)),
        compiler_params=pltpu.CompilerParams(
            dimension_semantics=("parallel",),
            vmem_limit_bytes=_VMEM_LIMIT),
    )(*args)
    return out, OH, OW


def tap_conv(x2, wt, shift, S, relu=True):
    """Standalone 3x3 conv + BN + ReLU via shift matrices (final head)."""
    cin, M = x2.shape
    taps, cout = wt.shape[0], wt.shape[1]
    M2 = S.shape[2]
    b = shift.reshape(cout, 1).astype(jnp.float32)
    return pl.pallas_call(
        functools.partial(_tap_conv_kernel, taps=taps, relu=relu),
        out_shape=jax.ShapeDtypeStruct((cout, M2), _BF16),
        grid=(1,),
        in_specs=[pl.BlockSpec((cin, M), lambda j: (0, 0)),
                  pl.BlockSpec((taps, cout, cin), lambda j: (0, 0, 0)),
                  pl.BlockSpec((cout, 1), lambda j: (0, 0)),
                  pl.BlockSpec((taps, M, M2), lambda j: (0, 0, 0))],
        out_specs=pl.BlockSpec((cout, M2), lambda j: (0, 0)),
    )(x2, wt, b, S)


_POOL_SIZES = (1, 2, 3, 6)


def ppm_forward(x2, params, B, H, W):
    C, M = x2.shape
    red = params["ppm_wst"].shape[1]
    eye_b = np.eye(B, dtype=np.float32)
    pks, uks = [], []
    for ps in _POOL_SIZES:
        pk = np.kron(_adaptive_pool_matrix(ps, H), _adaptive_pool_matrix(ps, W)).T
        uk = np.kron(_bilinear_matrix(H, ps), _bilinear_matrix(W, ps)).T
        pks.append(jnp.asarray(np.kron(eye_b, pk), _BF16))   # [B*HW, B*ps*ps]
        uks.append(jnp.asarray(np.kron(eye_b, uk), _BF16))   # [B*ps*ps, B*HW]
    bst = params["ppm_bst"].reshape(4, red, 1)
    bb = params["ppm_bb"].reshape(C, 1)

    in_specs = ([pl.BlockSpec((C, M), lambda j: (0, 0)),
                 pl.BlockSpec((4, red, C), lambda j: (0, 0, 0)),
                 pl.BlockSpec((4, red, 1), lambda j: (0, 0, 0)),
                 pl.BlockSpec((C, C), lambda j: (0, 0)),
                 pl.BlockSpec((4, C, red), lambda j: (0, 0, 0)),
                 pl.BlockSpec((C, 1), lambda j: (0, 0))]
                + [pl.BlockSpec(pk.shape, lambda j: (0, 0)) for pk in pks]
                + [pl.BlockSpec(uk.shape, lambda j: (0, 0)) for uk in uks])
    args = [x2, params["ppm_wst"], bst, params["ppm_wbx"], params["ppm_wbs"], bb] + pks + uks

    return pl.pallas_call(
        _ppm_kernel,
        out_shape=jax.ShapeDtypeStruct((C, M), _BF16),
        grid=(1,),
        in_specs=in_specs,
        out_specs=pl.BlockSpec((C, M), lambda j: (0, 0)),
    )(*args)


def classifier_resize(h2, w2t, b2, B, H, W, out_h, out_w):
    """Fused 1x1 classifier conv (+bias) and bilinear resize to (out_h, out_w)."""
    ncls, cin = w2t.shape
    M = h2.shape[1]
    Mout = B * out_h * out_w
    uk = np.kron(np.eye(B, dtype=np.float32),
                 np.kron(_bilinear_matrix(out_h, H), _bilinear_matrix(out_w, W)).T)
    uk = jnp.asarray(uk, _BF16)                               # [B*H*W, B*out_h*out_w]
    b = b2.reshape(ncls, 1).astype(jnp.float32)
    tn = 1024 if (Mout >= 2048 and Mout % 1024 == 0) else Mout
    grid = (Mout // tn,)
    return pl.pallas_call(
        _cls_resize_kernel,
        out_shape=jax.ShapeDtypeStruct((ncls, Mout), jnp.float32),
        grid=grid,
        in_specs=[pl.BlockSpec((cin, M), lambda j: (0, 0)),
                  pl.BlockSpec((ncls, cin), lambda j: (0, 0)),
                  pl.BlockSpec((ncls, 1), lambda j: (0, 0)),
                  pl.BlockSpec((M, tn), lambda j: (0, j))],
        out_specs=pl.BlockSpec((ncls, tn), lambda j: (0, j)),
        compiler_params=pltpu.CompilerParams(
            dimension_semantics=("parallel",),
            vmem_limit_bytes=_VMEM_LIMIT),
    )(h2, w2t, b, uk)


# ----------------------------------------------------------------------------
# Parameter construction (deterministic synthetic init, BN folded at build time)
# ----------------------------------------------------------------------------
def _conv_w(key, k, cin, cout):
    fan_in = k * k * cin
    return jax.random.normal(key, (k, k, cin, cout), jnp.float32) * np.sqrt(2.0 / fan_in)


def _bn(key, c):
    k1, k2, k3, k4 = jax.random.split(key, 4)
    gamma = 1.0 + 0.1 * jax.random.normal(k1, (c,))
    beta = 0.1 * jax.random.normal(k2, (c,))
    mean = 0.1 * jax.random.normal(k3, (c,))
    var = 1.0 + 0.1 * jnp.abs(jax.random.normal(k4, (c,)))
    scale = gamma * lax.rsqrt(var + 1e-5)
    shift = beta - mean * scale
    return scale.astype(jnp.float32), shift.astype(jnp.float32)


def _conv_bn_1x1(key, cin, cout):
    kw_, kb = jax.random.split(key)
    w = _conv_w(kw_, 1, cin, cout)
    scale, shift = _bn(kb, cout)
    wt = (w.reshape(cin, cout) * scale[None, :]).T.astype(_BF16)          # [cout, cin]
    return wt, shift


def _conv_bn_im2col(key, k, cin, cout):
    kw_, kb = jax.random.split(key)
    w = _conv_w(kw_, k, cin, cout)
    scale, shift = _bn(kb, cout)
    wt = (w.reshape(k * k * cin, cout) * scale[None, :]).T.astype(_BF16)  # [cout, k*k*cin]
    return wt, shift


def _conv_bn_taps(key, k, cin, cout):
    kw_, kb = jax.random.split(key)
    w = _conv_w(kw_, k, cin, cout)
    scale, shift = _bn(kb, cout)
    ws = w * scale[None, None, None, :]
    wt = jnp.transpose(ws.reshape(k * k, cin, cout), (0, 2, 1)).astype(_BF16)  # [k*k,cout,cin]
    return wt, shift


def _bottleneck_params(key, inplanes, planes, stride, downsample):
    ks = jax.random.split(key, 4)
    p = {"stride": stride}
    p["w1t"], p["b1"] = _conv_bn_1x1(ks[0], inplanes, planes)
    p["w2t"], p["b2"] = _conv_bn_taps(ks[1], 3, planes, planes)
    p["w3t"], p["b3"] = _conv_bn_1x1(ks[2], planes, planes * 4)
    if downsample:
        p["wdt"], p["bd"] = _conv_bn_1x1(ks[3], inplanes, planes * 4)
    return p


def _make_layer(key, inplanes, planes, blocks, stride):
    keys = jax.random.split(key, blocks)
    ds = (stride != 1) or (inplanes != planes * 4)
    params = [_bottleneck_params(keys[0], inplanes, planes, stride, ds)]
    inplanes = planes * 4
    for i in range(1, blocks):
        params.append(_bottleneck_params(keys[i], inplanes, planes, 1, False))
    return params, inplanes


def init_pspnet_params(key, num_classes, base_width=8, layers=(3, 4, 23, 3)):
    ks = jax.random.split(key, 12)
    p = {}
    p["conv1_wt"], p["conv1_b"] = _conv_bn_im2col(ks[0], 7, 3, base_width)
    inplanes = base_width
    p["layer1"], inplanes = _make_layer(ks[1], inplanes, base_width, layers[0], 1)
    p["layer2"], inplanes = _make_layer(ks[2], inplanes, base_width * 2, layers[1], 2)
    p["layer3"], inplanes = _make_layer(ks[3], inplanes, base_width * 4, layers[2], 2)
    p["layer4"], inplanes = _make_layer(ks[4], inplanes, base_width * 8, layers[3], 2)

    # Pyramid Pooling Module
    in_ch = inplanes
    red = in_ch // 4
    skeys = jax.random.split(ks[5], 4)
    wst, bst = [], []
    for i in range(4):
        wt, b = _conv_bn_1x1(skeys[i], in_ch, red)
        wst.append(wt)
        bst.append(b)
    p["ppm_wst"] = jnp.stack(wst, axis=0)                 # [4, red, in_ch]
    p["ppm_bst"] = jnp.stack(bst, axis=0)                 # [4, red]
    wbt, bb = _conv_bn_1x1(ks[6], in_ch + red * 4, in_ch)
    p["ppm_wbx"] = wbt[:, :in_ch]                         # bottleneck weight on x
    p["ppm_wbs"] = jnp.stack(
        [wbt[:, in_ch + s * red: in_ch + (s + 1) * red] for s in range(4)], axis=0)
    p["ppm_bb"] = bb

    # final head
    p["final_w1t"], p["final_b1"] = _conv_bn_taps(ks[7], 3, in_ch, in_ch // 4)
    kf1, kf2 = jax.random.split(ks[8])
    w2 = _conv_w(kf1, 1, in_ch // 4, num_classes)
    p["final_w2t"] = w2.reshape(in_ch // 4, num_classes).T.astype(_BF16)
    p["final_b2"] = (0.01 * jax.random.normal(kf2, (num_classes,))).astype(jnp.float32)
    return p


# ----------------------------------------------------------------------------
# Forward pass (activations in flattened CNHW layout [C, B*H*W] throughout)
# ----------------------------------------------------------------------------
def pspnet_forward(params, x_nchw):
    B = x_nchw.shape[0]
    in_h, in_w = x_nchw.shape[2], x_nchw.shape[3]
    x = jnp.transpose(x_nchw, (1, 0, 2, 3)).astype(_BF16)        # NCHW -> CNHW

    # layer0: 7x7/s2 conv + BN + ReLU, then 3x3/s2 max-pool
    x = conv2d_bn_act_im2col(x, params["conv1_wt"], params["conv1_b"], 7, 2, 3, relu=True)
    x = max_pool_3x3_s2_p1(x)
    C, _, H, W = x.shape
    x2 = x.reshape(C, B * H * W)

    geom = _GeomCache()
    for name in ("layer1", "layer2", "layer3", "layer4"):
        for bp in params[name]:
            x2, H, W = bottleneck_forward(x2, bp, B, H, W, geom)

    # Pyramid Pooling Module (single fused kernel)
    x2 = ppm_forward(x2, params, B, H, W)

    # final head: 3x3 conv + BN + ReLU; Dropout2d(0.1) == identity in eval mode;
    # then fused 1x1 classifier + bilinear resize to the input resolution.
    S_f, _, _ = geom.conv3x3(B, H, W, 1)
    x2 = tap_conv(x2, params["final_w1t"], params["final_b1"], S_f, relu=True)
    out = classifier_resize(x2, params["final_w2t"], params["final_b2"],
                            B, H, W, in_h, in_w)

    ncls = out.shape[0]
    out = out.reshape(ncls, B, in_h, in_w)
    return jnp.transpose(out, (1, 0, 2, 3)).astype(jnp.float32)  # CNHW -> NCHW


# ----------------------------------------------------------------------------
if __name__ == "__main__":
    key = jax.random.PRNGKey(0)
    kp, kx = jax.random.split(key)

    num_classes = 6
    params = init_pspnet_params(kp, num_classes, base_width=8, layers=(3, 4, 23, 3))

    # NCHW input like the PyTorch module (64x64 keeps a 2x2 feature map after the
    # backbone's /32 downsampling so the PPM stays meaningful).
    x = jax.random.normal(kx, (2, 3, 64, 64), jnp.float32)

    out = pspnet_forward(params, x)
    out = jax.block_until_ready(out)

    assert out.shape == (2, num_classes, 64, 64), out.shape
    assert jnp.all(jnp.isfinite(out))
    print("KERNEL_OK")
</pallas_src>

<mosaic_0001>
module attributes {stable_mosaic.version = 11 : i64} {
  func.func @_mm_kernel(%arg0: i32, %arg1: memref<8x147xbf16, #tpu.memory_space<vmem>>, %arg2: memref<147x1024xbf16, #tpu.memory_space<vmem>>, %arg3: memref<8x1xf32, #tpu.memory_space<vmem>>, %arg4: memref<8x1024xbf16, #tpu.memory_space<vmem>>) attributes {dimension_semantics = [#tpu.dimension_semantics<parallel>], iteration_bounds = array<i64: 2>, scalar_prefetch = 0 : i64, scratch_operands = 0 : i64, tpu.core_type = #tpu.core_type<tc>, window_params = [{pipeline_mode = #tpu.pipeline_mode<synchronous>, transform_indices = @transform_0, window_bounds = array<i64: 8, 147>}, {transform_indices = @transform_1, window_bounds = array<i64: 147, 1024>}, {pipeline_mode = #tpu.pipeline_mode<synchronous>, transform_indices = @transform_2, window_bounds = array<i64: 8, 1>}, {transform_indices = @transform_3, window_bounds = array<i64: 8, 1024>}]} {
    %c0 = arith.constant 0 : index
    %c0_0 = arith.constant 0 : index
    %0 = vector.load %arg1[%c0, %c0_0] : memref<8x147xbf16, #tpu.memory_space<vmem>>, vector<8x147xbf16>
    %c0_1 = arith.constant 0 : index
    %c0_2 = arith.constant 0 : index
    %1 = vector.load %arg2[%c0_1, %c0_2] : memref<147x1024xbf16, #tpu.memory_space<vmem>>, vector<147x1024xbf16>
    %cst = arith.constant dense<0.000000e+00> : vector<8x1024xf32>
    %2 = tpu.matmul %0, %1, %cst {dimension_numbers = #tpu.dot_dimension_numbers<[1], [0], [0], [1], [0, 0, 1, 1], [], []>} : vector<8x147xbf16>, vector<147x1024xbf16>, vector<8x1024xf32> -> vector<8x1024xf32>
    %c0_3 = arith.constant 0 : index
    %c0_4 = arith.constant 0 : index
    %3 = vector.load %arg3[%c0_3, %c0_4] : memref<8x1xf32, #tpu.memory_space<vmem>>, vector<8x1xf32>
    %4 = vector.broadcast %3 : vector<8x1xf32> to vector<8x1024xf32>
    %5 = arith.addf %2, %4 : vector<8x1024xf32>
    %cst_5 = arith.constant 0.000000e+00 : f32
    %6 = vector.broadcast %cst_5 : f32 to vector<8x1024xf32>
    %7 = arith.maximumf %5, %6 : vector<8x1024xf32>
    %8 = arith.truncf %7 : vector<8x1024xf32> to vector<8x1024xbf16>
    %c0_6 = arith.constant 0 : index
    %c0_7 = arith.constant 0 : index
    %9 = vector.load %arg4[%c0_6, %c0_7] : memref<8x1024xbf16, #tpu.memory_space<vmem>>, vector<8x1024xbf16>
    tpu.vector_store %arg4[%c0_6, %c0_7], %8 {strides = array<i32>} : memref<8x1024xbf16, #tpu.memory_space<vmem>>, vector<8x1024xbf16>,
    return
  }
  func.func @transform_0(%arg0: i32) -> (i32, i32) {
    %c0_i32 = arith.constant 0 : i32
    %c0_i32_0 = arith.constant 0 : i32
    %c0_i32_1 = arith.constant 0 : i32
    return %c0_i32, %c0_i32_0 : i32, i32
  }
  func.func @transform_1(%arg0: i32) -> (i32, i32) {
    %c0_i32 = arith.constant 0 : i32
    %c0_i32_0 = arith.constant 0 : i32
    return %c0_i32, %arg0 : i32, i32
  }
  func.func @transform_2(%arg0: i32) -> (i32, i32) {
    %c0_i32 = arith.constant 0 : i32
    %c0_i32_0 = arith.constant 0 : i32
    %c0_i32_1 = arith.constant 0 : i32
    return %c0_i32, %c0_i32_0 : i32, i32
  }
  func.func @transform_3(%arg0: i32) -> (i32, i32) {
    %c0_i32 = arith.constant 0 : i32
    %c0_i32_0 = arith.constant 0 : i32
    return %c0_i32, %arg0 : i32, i32
  }
}

</mosaic_0001>

<llo_original>
// kernel: tpu_custom_call.1
$region0: #{tpu_custom_call.1}
  #allocation0 [shape = 'u32[]', space=smem, size = 0x4, offset = 0x4, fixed_abs, tag = 'smem constant byte address 0x4 - core index']
  #allocation1 [shape = 'u32[72,128]{1,0:T(1,128)}', space=vmem, size = 0x9000, scoped, tag = 'internal scratch']
  %s0 = inlined_call_operand.vmem [shape: bf16[8,147], index: 0, kind: input, shape index: {}]
  %s1 = inlined_call_operand.hbm [shape: bf16[147,2048], index: 1, kind: input, shape index: {}]
  %s2 = inlined_call_operand.vmem [shape: f32[8,1], index: 2, kind: input, shape index: {}]
  %s3 = inlined_call_operand.hbm [shape: bf16[8,2048], index: 3, kind: output, shape index: {}]
  %s4 = sld [smem:[#allocation0]]
  $region49: #{tpu_custom_call.1} parent=0
    _
  %s6 = ssub.s32 1, %s4
  %s7 = scalar_select 0, %s6, %s4
  $region1: #{tpu_custom_call.1} parent=0
    #allocation2 [shape = 'u8[622592]{0}', space=vmem, size = 0x98000, scoped, tag = 'input window, operand 1']
    #allocation3 [shape = 's32[2]{0}', space=sflag, size = 0x8, scoped, tag = 'scoped memory for tpu_custom_call.1']
    #allocation4 [shape = 's32[2]{0}', space=sflag, size = 0x8, scoped, tag = 'scoped memory for tpu_custom_call.1']
    #allocation5 [shape = 'u8[32768]{0}', space=vmem, size = 0x8000, scoped, tag = 'output window, operand 0']
    %8 = vsyncpa [#allocation3], 0
    %s9 = scalar_lea.sflag [#allocation3], 1
    %10 = vsyncpa %s9, 0
    %11 = vsyncpa [#allocation4], 0
    %s12 = scalar_lea.sflag [#allocation4], 1
    %13 = vsyncpa %s12, 0
    loop: start=0, step=1, limit=4
    $region2: #{tpu_custom_call.1} parent=1 // loop_pre_header
      _
    $region3: #{tpu_custom_call.1} parent=1 // loop_header
      %s15 = sphi 0, %s19
      %p16 = scmp.ge.s32.totalorder %s15, 4
      %s23 = sphi 0, %s23
      %s25 = sphi 0, %s23
      %s26 = sphi 0, %s25
      %s40 = sphi 0, %s26
      %s46 = sphi 0, %s48
      %s49 = sphi 0, %s46
      %s50 = sphi 0, %s49
      %s66 = sphi 0, %s50
      %s70 = sphi 0, %s70
      %s72 = sphi 0, %s70
      %s73 = sphi 0, %s72
      %s87 = sphi 0, %s73
      %s93 = sphi 0, %s95
      %s96 = sphi 0, %s93
      %s97 = sphi 0, %s96
      %s113 = sphi 0, %s97
    $region4: #{tpu_custom_call.1} parent=1 // loop_header_branch
      %18 = sbr.rel (%p16) target = $region8
    $region5: #{tpu_custom_call.1} parent=1 // loop_body
      %s20 = ssub.s32 %s15, 1
      %s21 = ssub.s32 %s15, 2
      %s22 = sadd.s32 %s15, 1
      %s24 = sadd.s32 %s23, 1
      %p27 = scmp.eq.s32.totalorder %s15, 1
      %p28 = scmp.ne.s32.totalorder %s23, %s25
      %p29 = scmp.eq.s32.totalorder %s15, 0
      %p30 = por %p28, %p29
      %p31 = scmp.ne.s32.totalorder %s23, %s25
      %p32 = scmp.eq.s32.totalorder %s20, 1
      %p33 = por %p31, %p32
      %p34 = scmp.ne.s32.totalorder %s25, %s26
      %p35 = scmp.eq.s32.totalorder %s20, 0
      %p36 = por %p34, %p35
      %p37 = scmp.ne.s32.totalorder %s25, %s26
      %p38 = scmp.eq.s32.totalorder %s21, 1
      %p39 = por %p37, %p38
      %p41 = scmp.ne.s32.totalorder %s26, %s40
      %p42 = scmp.eq.s32.totalorder %s21, 0
      %p43 = por %p41, %p42
      %s44 = ssub.s32 %s15, %s22
      %p45 = scmp.eq.s32.totalorder %s44, 0
      %s47 = sadd.s32 %s46, 1
      %s48 = scalar_select %p45, %s46, %s47
      %p51 = pneg %p45
      %p52 = scmp.eq.s32.totalorder %s15, 1
      %p53 = por %p51, %p52
      %p54 = scmp.ne.s32.totalorder %s46, %s49
      %p55 = scmp.eq.s32.totalorder %s15, 0
      %p56 = por %p54, %p55
      %p57 = scmp.ne.s32.totalorder %s46, %s49
      %p58 = scmp.eq.s32.totalorder %s20, 1
      %p59 = por %p57, %p58
      %p60 = scmp.ne.s32.totalorder %s49, %s50
      %p61 = scmp.eq.s32.totalorder %s20, 0
      %p62 = por %p60, %p61
      %p63 = scmp.ne.s32.totalorder %s49, %s50
      %p64 = scmp.eq.s32.totalorder %s21, 1
      %p65 = por %p63, %p64
      %p67 = scmp.ne.s32.totalorder %s50, %s66
      %p68 = scmp.eq.s32.totalorder %s21, 0
      %p69 = por %p67, %p68
      %s71 = sadd.s32 %s70, 1
      %p74 = scmp.eq.s32.totalorder %s15, 1
      %p75 = scmp.ne.s32.totalorder %s70, %s72
      %p76 = scmp.eq.s32.totalorder %s15, 0
      %p77 = por %p75, %p76
      %p78 = scmp.ne.s32.totalorder %s70, %s72
      %p79 = scmp.eq.s32.totalorder %s20, 1
      %p80 = por %p78, %p79
      %p81 = scmp.ne.s32.totalorder %s72, %s73
      %p82 = scmp.eq.s32.totalorder %s20, 0
      %p83 = por %p81, %p82
      %p84 = scmp.ne.s32.totalorder %s72, %s73
      %p85 = scmp.eq.s32.totalorder %s21, 1
      %p86 = por %p84, %p85
      %p88 = scmp.ne.s32.totalorder %s73, %s87
      %p89 = scmp.eq.s32.totalorder %s21, 0
      %p90 = por %p88, %p89
      %s91 = ssub.s32 %s15, %s22
      %p92 = scmp.eq.s32.totalorder %s91, 0
      %s94 = sadd.s32 %s93, 1
      %s95 = scalar_select %p92, %s93, %s94
      %p98 = pneg %p92
      %p99 = scmp.eq.s32.totalorder %s15, 1
      %p100 = por %p98, %p99
      %p101 = scmp.ne.s32.totalorder %s93, %s96
      %p102 = scmp.eq.s32.totalorder %s15, 0
      %p103 = por %p101, %p102
      %p104 = scmp.ne.s32.totalorder %s93, %s96
      %p105 = scmp.eq.s32.totalorder %s20, 1
      %p106 = por %p104, %p105
      %p107 = scmp.ne.s32.totalorder %s96, %s97
      %p108 = scmp.eq.s32.totalorder %s20, 0
      %p109 = por %p107, %p108
      %p110 = scmp.ne.s32.totalorder %s96, %s97
      %p111 = scmp.eq.s32.totalorder %s21, 1
      %p112 = por %p110, %p111
      %p114 = scmp.ne.s32.totalorder %s97, %s113
      %p115 = scmp.eq.s32.totalorder %s21, 0
      %p116 = por %p114, %p115
      %p117 = scmp.le.s32.totalorder 1, %s15
      %p118 = scmp.lt.s32.totalorder %s15, 3
      %p119 = pnand %p117, %p118
      %p120 = pneg %p119
      // Predicated region
      $region9: #{tpu_custom_call.1} parent=5 // pred_check
        _
      $region10: #{tpu_custom_call.1} parent=5 // pred_check_branch
        %122 = sbr.rel (%p119) target = $region12
      $region11: #{tpu_custom_call.1} parent=5 // pred_region
        %s123 = ssub.s32 %s15, 1
        // Predicated region
        $region13: #{tpu_custom_call.1} parent=11 // pred_check
          %p124 = pneg %p36
        $region14: #{tpu_custom_call.1} parent=11 // pred_check_branch
          %126 = sbr.rel (%p124) target = $region16
        $region15: #{tpu_custom_call.1} parent=11 // pred_region
          _
        $region16: #{tpu_custom_call.1} parent=11 // pred_fallthru
          _
        // Predicated region
        $region17: #{tpu_custom_call.1} parent=11 // pred_check
          %p127 = pneg %p83
        $region18: #{tpu_custom_call.1} parent=11 // pred_check_branch
          %129 = sbr.rel (%p127) target = $region20
        $region19: #{tpu_custom_call.1} parent=11 // pred_region
          _
        $region20: #{tpu_custom_call.1} parent=11 // pred_fallthru
          _
      $region12: #{tpu_custom_call.1} parent=5 // pred_fallthru
        _
      %p130 = scmp.lt.s32.totalorder %s15, 2
      // Predicated region
      $region21: #{tpu_custom_call.1} parent=5 // pred_check
        %p131 = pneg %p130
      $region22: #{tpu_custom_call.1} parent=5 // pred_check_branch
        %133 = sbr.rel (%p131) target = $region24
      $region23: #{tpu_custom_call.1} parent=5 // pred_region
        // Predicated region
        $region25: #{tpu_custom_call.1} parent=23 // pred_check
          %p134 = pneg %p56
        $region26: #{tpu_custom_call.1} parent=23 // pred_check_branch
          %136 = sbr.rel (%p134) target = $region28
        $region27: #{tpu_custom_call.1} parent=23 // pred_region
          %s137 = sand.u32 %s46, 1
          %s138 = scalar_lea.sflag [#allocation3], %s137
          %s139 = sand.u32 %s46, 1
          %s140 = smul.addr %s139, 608
          %s141 = scalar_lea.vmem [#allocation2], %s140
          %s142 = smul.u32 8, %s15
          %144 = vsyncadd %s138, 0
          %s145 = smul.addr %s142, 4
          %s146 = scalar_lea.hbm %s1, %s145
          %s147 = sshll.u32 %s146, 4
          %s148 = int_to_ptr.hbm [resolvable:$true] %s147
          %s149 = sshll.u32 %s141, 4
          %s150 = int_to_ptr.vmem [resolvable:$true] %s149
          %155 = dma.hbm_to_vmem [thread:$0]  %s148, 9728, %s150, %s138, 1024, 512, 32
        $region28: #{tpu_custom_call.1} parent=23 // pred_fallthru
          _
      $region24: #{tpu_custom_call.1} parent=5 // pred_fallthru
        _
      %p156 = scmp.le.s32.totalorder 1, %s15
      %p157 = scmp.lt.s32.totalorder %s15, 3
      %p158 = pnand %p156, %p157
      %p159 = pneg %p158
      // Predicated region
      $region29: #{tpu_custom_call.1} parent=5 // pred_check
        _
      $region30: #{tpu_custom_call.1} parent=5 // pred_check_branch
        %161 = sbr.rel (%p158) target = $region32
      $region31: #{tpu_custom_call.1} parent=5 // pred_region
        %s162 = ssub.s32 %s15, 1
        %s163 = sand.u32 %s49, 1
        %s164 = scalar_lea.sflag [#allocation3], %s163
        %s165 = sand.u32 %s49, 1
        %s166 = smul.addr %s165, 608
        %s167 = scalar_lea.vmem [#allocation2], %s166
        // Predicated region
        $region33: #{tpu_custom_call.1} parent=31 // pred_check
          %p168 = pneg %p62
        $region34: #{tpu_custom_call.1} parent=31 // pred_check_branch
          %170 = sbr.rel (%p168) target = $region36
        $region35: #{tpu_custom_call.1} parent=31 // pred_region
          %172 = dma.done %s164, 9728
        $region36: #{tpu_custom_call.1} parent=31 // pred_fallthru
          _
        %p173 = pneg %p36
        %p174 = pneg %p33
        %s175 = sand.u32 %s49, 1
        %s176 = scalar_lea.sflag [#allocation3], %s175
        %s177 = sand.u32 %s49, 1
        %s178 = smul.addr %s177, 608
        %s179 = scalar_lea.vmem [#allocation2], %s178
        %p180 = pneg %p62
        %p181 = pneg %p59
        %p182 = pneg %p83
        %p183 = pneg %p80
        %p184 = pneg %p109
        %p185 = pneg %p106
        %s186 = sand.u32 %s96, 1
        %s187 = scalar_lea.sflag [#allocation4], %s186
        %s188 = sand.u32 %s96, 1
        %s189 = smul.addr %s188, 32
        %s190 = scalar_lea.vmem [#allocation5], %s189
        %s191 = smul.u32 8, %s20
        %s192 = smul.u32 8, %s20
        %v194 = vld [vmem:[%s0] sm:$0xff]
        %v195 = vld [vmem:[%s167] sm:$0xff]
        %v196 = vld [vmem:[%s167 + $0x8] sm:$0xff]
        %v197 = vld [vmem:[%s167 + $0x10] sm:$0xff]
        %v198 = vld [vmem:[%s167 + $0x18] sm:$0xff]
        %v199 = vld [vmem:[%s167 + $0x20] sm:$0xff]
        %v200 = vld [vmem:[%s167 + $0x28] sm:$0xff]
        %v201 = vld [vmem:[%s167 + $0x30] sm:$0xff]
        %v202 = vld [vmem:[%s167 + $0x38] sm:$0xff]
        %v203 = vld [vmem:[%s167 + $0x40] sm:$0xff]
        %v204 = vld [vmem:[%s167 + $0x48] sm:$0xff]
        %v205 = vld [vmem:[%s167 + $0x50] sm:$0xff]
        %v206 = vld [vmem:[%s167 + $0x58] sm:$0xff]
        %v207 = vld [vmem:[%s167 + $0x60] sm:$0xff]
        %v208 = vld [vmem:[%s167 + $0x68] sm:$0xff]
        %v209 = vld [vmem:[%s167 + $0x70] sm:$0xff]
        %v210 = vld [vmem:[%s167 + $0x78] sm:$0xff]
        %v211 = vld [vmem:[%s167 + $0x80] sm:$0xff]
        %v212 = vld [vmem:[%s167 + $0x88] sm:$0xff]
        %v213 = vld [vmem:[%s167 + $0x90] sm:$0xff]
        %v214 = vld [vmem:[%s167 + $0x98] sm:$0xff]
        %v215 = vld [vmem:[%s167 + $0xa0] sm:$0xff]
        %v216 = vld [vmem:[%s167 + $0xa8] sm:$0xff]
        %v217 = vld [vmem:[%s167 + $0xb0] sm:$0xff]
        %v218 = vld [vmem:[%s167 + $0xb8] sm:$0xff]
        %v219 = vld [vmem:[%s167 + $0xc0] sm:$0xff]
        %v220 = vld [vmem:[%s167 + $0xc8] sm:$0xff]
        %v221 = vld [vmem:[%s167 + $0xd0] sm:$0xff]
        %v222 = vld [vmem:[%s167 + $0xd8] sm:$0xff]
        %v223 = vld [vmem:[%s167 + $0xe0] sm:$0xff]
        %v224 = vld [vmem:[%s167 + $0xe8] sm:$0xff]
        %v225 = vld [vmem:[%s167 + $0xf0] sm:$0xff]
        %v226 = vld [vmem:[%s167 + $0xf8] sm:$0xff]
        %v227 = vld [vmem:[%s167 + $0x100] sm:$0xff]
        %v228 = vld [vmem:[%s167 + $0x108] sm:$0xff]
        %v229 = vld [vmem:[%s167 + $0x110] sm:$0xff]
        %v230 = vld [vmem:[%s167 + $0x118] sm:$0xff]
        %v231 = vld [vmem:[%s167 + $0x120] sm:$0xff]
        %v232 = vld [vmem:[%s167 + $0x128] sm:$0xff]
        %v233 = vld [vmem:[%s167 + $0x130] sm:$0xff]
        %v234 = vld [vmem:[%s167 + $0x138] sm:$0xff]
        %v235 = vld [vmem:[%s167 + $0x140] sm:$0xff]
        %v236 = vld [vmem:[%s167 + $0x148] sm:$0xff]
        %v237 = vld [vmem:[%s167 + $0x150] sm:$0xff]
        %v238 = vld [vmem:[%s167 + $0x158] sm:$0xff]
        %v239 = vld [vmem:[%s167 + $0x160] sm:$0xff]
        %v240 = vld [vmem:[%s167 + $0x168] sm:$0xff]
        %v241 = vld [vmem:[%s167 + $0x170] sm:$0xff]
        %v242 = vld [vmem:[%s167 + $0x178] sm:$0xff]
        %v243 = vld [vmem:[%s167 + $0x180] sm:$0xff]
        %v244 = vld [vmem:[%s167 + $0x188] sm:$0xff]
        %v245 = vld [vmem:[%s167 + $0x190] sm:$0xff]
        %v246 = vld [vmem:[%s167 + $0x198] sm:$0xff]
        %v247 = vld [vmem:[%s167 + $0x1a0] sm:$0xff]
        %v248 = vld [vmem:[%s167 + $0x1a8] sm:$0xff]
        %v249 = vld [vmem:[%s167 + $0x1b0] sm:$0xff]
        %v250 = vld [vmem:[%s167 + $0x1b8] sm:$0xff]
        %v251 = vld [vmem:[%s167 + $0x1c0] sm:$0xff]
        %v252 = vld [vmem:[%s167 + $0x1c8] sm:$0xff]
        %v253 = vld [vmem:[%s167 + $0x1d0] sm:$0xff]
        %v254 = vld [vmem:[%s167 + $0x1d8] sm:$0xff]
        %v255 = vld [vmem:[%s167 + $0x1e0] sm:$0xff]
        %v256 = vld [vmem:[%s167 + $0x1e8] sm:$0xff]
        %v257 = vld [vmem:[%s167 + $0x1f0] sm:$0xff]
        %v258 = vld [vmem:[%s167 + $0x1f8] sm:$0xff]
        %v259 = vld [vmem:[%s167 + $0x200] sm:$0xff]
        %v260 = vld [vmem:[%s167 + $0x208] sm:$0xff]
        %v261 = vld [vmem:[%s167 + $0x210] sm:$0xff]
        %v262 = vld [vmem:[%s167 + $0x218] sm:$0xff]
        %v263 = vld [vmem:[%s167 + $0x220] sm:$0xff]
        %v264 = vld [vmem:[%s167 + $0x228] sm:$0xff]
        %v265 = vld [vmem:[%s167 + $0x230] sm:$0xff]
        %v266 = vld [vmem:[%s167 + $0x238] sm:$0xff]
        %v267 = vld [vmem:[%s167 + $0x240] sm:$0x33]
        %v268 = vld [vmem:[%s167 + $0x248] sm:$0x33]
        %v269 = vld [vmem:[%s167 + $0x250] sm:$0x33]
        %v270 = vld [vmem:[%s167 + $0x258] sm:$0x33]
        %v271 = vld [vmem:[%s2] sm:$0xff]
        %273 = vset.pattern.permute.xlu0 0
        %274 = vperm.xlu0 %273, %v271
        %v275 = vpop.permute.xlu0 %274
        %v278 = vunpack.c.l.b16 %v194
        %v279 = vunpack.c.h.b16 %v194
        %v280 = vpack.c.b16 %v278, %v278
        %v281 = vpack.c.b16 %v279, %v279
        %v359 = vunpack.c.l.b16 %v195
        %v360 = vunpack.c.h.b16 %v195
        %v361 = vunpack.c.l.b16 %v196
        %v362 = vunpack.c.h.b16 %v196
        %v363 = vunpack.c.l.b16 %v197
        %v364 = vunpack.c.h.b16 %v197
        %v365 = vunpack.c.l.b16 %v198
        %v366 = vunpack.c.h.b16 %v198
        %v367 = vunpack.c.l.b16 %v199
        %v368 = vunpack.c.h.b16 %v199
        %v369 = vunpack.c.l.b16 %v200
        %v370 = vunpack.c.h.b16 %v200
        %v371 = vunpack.c.l.b16 %v201
        %v372 = vunpack.c.h.b16 %v201
        %v373 = vunpack.c.l.b16 %v202
        %v374 = vunpack.c.h.b16 %v202
        %v375 = vunpack.c.l.b16 %v203
        %v376 = vunpack.c.h.b16 %v203
        %v377 = vunpack.c.l.b16 %v204
        %v378 = vunpack.c.h.b16 %v204
        %v379 = vunpack.c.l.b16 %v205
        %v380 = vunpack.c.h.b16 %v205
        %v381 = vunpack.c.l.b16 %v206
        %v382 = vunpack.c.h.b16 %v206
        %v383 = vunpack.c.l.b16 %v207
        %v384 = vunpack.c.h.b16 %v207
        %v385 = vunpack.c.l.b16 %v208
        %v386 = vunpack.c.h.b16 %v208
        %v387 = vunpack.c.l.b16 %v209
        %v388 = vunpack.c.h.b16 %v209
        %v389 = vunpack.c.l.b16 %v210
        %v390 = vunpack.c.h.b16 %v210
        %v391 = vunpack.c.l.b16 %v211
        %v392 = vunpack.c.h.b16 %v211
        %v393 = vunpack.c.l.b16 %v212
        %v394 = vunpack.c.h.b16 %v212
        %v395 = vunpack.c.l.b16 %v213
        %v396 = vunpack.c.h.b16 %v213
        %v397 = vunpack.c.l.b16 %v214
        %v398 = vunpack.c.h.b16 %v214
        %v399 = vunpack.c.l.b16 %v215
        %v400 = vunpack.c.h.b16 %v215
        %v401 = vunpack.c.l.b16 %v216
        %v402 = vunpack.c.h.b16 %v216
        %v403 = vunpack.c.l.b16 %v217
        %v404 = vunpack.c.h.b16 %v217
        %v405 = vunpack.c.l.b16 %v218
        %v406 = vunpack.c.h.b16 %v218
        %v407 = vunpack.c.l.b16 %v219
        %v408 = vunpack.c.h.b16 %v219
        %v409 = vunpack.c.l.b16 %v220
        %v410 = vunpack.c.h.b16 %v220
        %v411 = vunpack.c.l.b16 %v221
        %v412 = vunpack.c.h.b16 %v221
        %v413 = vunpack.c.l.b16 %v222
        %v414 = vunpack.c.h.b16 %v222
        %v415 = vunpack.c.l.b16 %v223
        %v416 = vunpack.c.h.b16 %v223
        %v417 = vunpack.c.l.b16 %v224
        %v418 = vunpack.c.h.b16 %v224
        %v419 = vunpack.c.l.b16 %v225
        %v420 = vunpack.c.h.b16 %v225
        %v421 = vunpack.c.l.b16 %v226
        %v422 = vunpack.c.h.b16 %v226
        %v423 = vunpack.c.l.b16 %v227
        %v424 = vunpack.c.h.b16 %v227
        %v425 = vunpack.c.l.b16 %v228
        %v426 = vunpack.c.h.b16 %v228
        %v427 = vunpack.c.l.b16 %v229
        %v428 = vunpack.c.h.b16 %v229
        %v429 = vunpack.c.l.b16 %v230
        %v430 = vunpack.c.h.b16 %v230
        %v431 = vunpack.c.l.b16 %v231
        %v432 = vunpack.c.h.b16 %v231
        %v433 = vunpack.c.l.b16 %v232
        %v434 = vunpack.c.h.b16 %v232
        %v435 = vunpack.c.l.b16 %v233
        %v436 = vunpack.c.h.b16 %v233
        %v437 = vunpack.c.l.b16 %v234
        %v438 = vunpack.c.h.b16 %v234
        %v439 = vunpack.c.l.b16 %v235
        %v440 = vunpack.c.h.b16 %v235
        %v441 = vunpack.c.l.b16 %v236
        %v442 = vunpack.c.h.b16 %v236
        %v443 = vunpack.c.l.b16 %v237
        %v444 = vunpack.c.h.b16 %v237
        %v445 = vunpack.c.l.b16 %v238
        %v446 = vunpack.c.h.b16 %v238
        %v447 = vunpack.c.l.b16 %v239
        %v448 = vunpack.c.h.b16 %v239
        %v449 = vunpack.c.l.b16 %v240
        %v450 = vunpack.c.h.b16 %v240
        %v451 = vunpack.c.l.b16 %v241
        %v452 = vunpack.c.h.b16 %v241
        %v453 = vunpack.c.l.b16 %v242
        %v454 = vunpack.c.h.b16 %v242
        %v455 = vunpack.c.l.b16 %v243
        %v456 = vunpack.c.h.b16 %v243
        %v457 = vunpack.c.l.b16 %v244
        %v458 = vunpack.c.h.b16 %v244
        %v459 = vunpack.c.l.b16 %v245
        %v460 = vunpack.c.h.b16 %v245
        %v461 = vunpack.c.l.b16 %v246
        %v462 = vunpack.c.h.b16 %v246
        %v463 = vunpack.c.l.b16 %v247
        %v464 = vunpack.c.h.b16 %v247
        %v465 = vunpack.c.l.b16 %v248
        %v466 = vunpack.c.h.b16 %v248
        %v467 = vunpack.c.l.b16 %v249
        %v468 = vunpack.c.h.b16 %v249
        %v469 = vunpack.c.l.b16 %v250
        %v470 = vunpack.c.h.b16 %v250
        %v471 = vunpack.c.l.b16 %v251
        %v472 = vunpack.c.h.b16 %v251
        %v473 = vunpack.c.l.b16 %v252
        %v474 = vunpack.c.h.b16 %v252
        %v475 = vunpack.c.l.b16 %v253
        %v476 = vunpack.c.h.b16 %v253
        %v477 = vunpack.c.l.b16 %v254
        %v478 = vunpack.c.h.b16 %v254
        %v479 = vunpack.c.l.b16 %v255
        %v480 = vunpack.c.h.b16 %v255
        %v481 = vunpack.c.l.b16 %v256
        %v482 = vunpack.c.h.b16 %v256
        %v483 = vunpack.c.l.b16 %v257
        %v484 = vunpack.c.h.b16 %v257
        %v485 = vunpack.c.l.b16 %v258
        %v486 = vunpack.c.h.b16 %v258
        %v487 = vunpack.c.l.b16 %v259
        %v488 = vunpack.c.h.b16 %v259
        %v489 = vunpack.c.l.b16 %v260
        %v490 = vunpack.c.h.b16 %v260
        %v491 = vunpack.c.l.b16 %v261
        %v492 = vunpack.c.h.b16 %v261
        %v493 = vunpack.c.l.b16 %v262
        %v494 = vunpack.c.h.b16 %v262
        %v495 = vunpack.c.l.b16 %v263
        %v496 = vunpack.c.h.b16 %v263
        %v497 = vunpack.c.l.b16 %v264
        %v498 = vunpack.c.h.b16 %v264
        %v499 = vunpack.c.l.b16 %v265
        %v500 = vunpack.c.h.b16 %v265
        %v501 = vunpack.c.l.b16 %v266
        %v502 = vunpack.c.h.b16 %v266
        %v503 = vunpack.c.l.b16 %v267
        %v504 = vunpack.c.h.b16 %v267
        %v505 = vunpack.c.l.b16 %v268
        %v506 = vunpack.c.h.b16 %v268
        %v507 = vunpack.c.l.b16 %v269
        %v508 = vunpack.c.h.b16 %v269
        %v509 = vunpack.c.l.b16 %v270
        %v510 = vunpack.c.h.b16 %v270
        %v511 = vpack.c.b16 %v367, %v359
        %v512 = vpack.c.b16 %v368, %v360
        %v513 = vpack.c.b16 %v369, %v361
        %v514 = vpack.c.b16 %v370, %v362
        %v515 = vpack.c.b16 %v371, %v363
        %v516 = vpack.c.b16 %v372, %v364
        %v517 = vpack.c.b16 %v373, %v365
        %v518 = vpack.c.b16 %v374, %v366
        %v519 = vpack.c.b16 %v383, %v375
        %v520 = vpack.c.b16 %v384, %v376
        %v521 = vpack.c.b16 %v385, %v377
        %v522 = vpack.c.b16 %v386, %v378
        %v523 = vpack.c.b16 %v387, %v379
        %v524 = vpack.c.b16 %v388, %v380
        %v525 = vpack.c.b16 %v389, %v381
        %v526 = vpack.c.b16 %v390, %v382
        %v527 = vpack.c.b16 %v399, %v391
        %v528 = vpack.c.b16 %v400, %v392
        %v529 = vpack.c.b16 %v401, %v393
        %v530 = vpack.c.b16 %v402, %v394
        %v531 = vpack.c.b16 %v403, %v395
        %v532 = vpack.c.b16 %v404, %v396
        %v533 = vpack.c.b16 %v405, %v397
        %v534 = vpack.c.b16 %v406, %v398
        %v535 = vpack.c.b16 %v415, %v407
        %v536 = vpack.c.b16 %v416, %v408
        %v537 = vpack.c.b16 %v417, %v409
        %v538 = vpack.c.b16 %v418, %v410
        %v539 = vpack.c.b16 %v419, %v411
        %v540 = vpack.c.b16 %v420, %v412
        %v541 = vpack.c.b16 %v421, %v413
        %v542 = vpack.c.b16 %v422, %v414
        %v543 = vpack.c.b16 %v431, %v423
        %v544 = vpack.c.b16 %v432, %v424
        %v545 = vpack.c.b16 %v433, %v425
        %v546 = vpack.c.b16 %v434, %v426
        %v547 = vpack.c.b16 %v435, %v427
        %v548 = vpack.c.b16 %v436, %v428
        %v549 = vpack.c.b16 %v437, %v429
        %v550 = vpack.c.b16 %v438, %v430
        %v551 = vpack.c.b16 %v447, %v439
        %v552 = vpack.c.b16 %v448, %v440
        %v553 = vpack.c.b16 %v449, %v441
        %v554 = vpack.c.b16 %v450, %v442
        %v555 = vpack.c.b16 %v451, %v443
        %v556 = vpack.c.b16 %v452, %v444
        %v557 = vpack.c.b16 %v453, %v445
        %v558 = vpack.c.b16 %v454, %v446
        %v559 = vpack.c.b16 %v463, %v455
        %v560 = vpack.c.b16 %v464, %v456
        %v561 = vpack.c.b16 %v465, %v457
        %v562 = vpack.c.b16 %v466, %v458
        %v563 = vpack.c.b16 %v467, %v459
        %v564 = vpack.c.b16 %v468, %v460
        %v565 = vpack.c.b16 %v469, %v461
        %v566 = vpack.c.b16 %v470, %v462
        %v567 = vpack.c.b16 %v479, %v471
        %v568 = vpack.c.b16 %v480, %v472
        %v569 = vpack.c.b16 %v481, %v473
        %v570 = vpack.c.b16 %v482, %v474
        %v571 = vpack.c.b16 %v483, %v475
        %v572 = vpack.c.b16 %v484, %v476
        %v573 = vpack.c.b16 %v485, %v477
        %v574 = vpack.c.b16 %v486, %v478
        %v575 = vpack.c.b16 %v495, %v487
        %v576 = vpack.c.b16 %v496, %v488
        %v577 = vpack.c.b16 %v497, %v489
        %v578 = vpack.c.b16 %v498, %v490
        %v579 = vpack.c.b16 %v499, %v491
        %v580 = vpack.c.b16 %v500, %v492
        %v581 = vpack.c.b16 %v501, %v493
        %v582 = vpack.c.b16 %v502, %v494
        %v583 = vpack.c.b16 %v503, %v503
        %v584 = vpack.c.b16 %v504, %v504
        %v585 = vpack.c.b16 %v505, %v505
        %v586 = vpack.c.b16 %v506, %v506
        %v587 = vpack.c.b16 %v507, %v507
        %v588 = vpack.c.b16 %v508, %v508
        %v589 = vpack.c.b16 %v509, %v509
        %v590 = vpack.c.b16 %v510, %v510
        %vm663 = vcmask 154624
        %v665 = vsel %vm663, %v281, 0
        %vm667 = vcmask 1040384
        %vm668 = vcmask 1041408
        %v669 = vsel %vm667, 4294967295, 65535
        %v670 = vsel %vm668, %v669, 0
        %v672 = vand.u32 %v583, %v670
        %v675 = vand.u32 %v584, %v670
        %v678 = vand.u32 %v585, %v670
        %v681 = vand.u32 %v586, %v670
        %v684 = vand.u32 %v587, %v670
        %v687 = vand.u32 %v588, %v670
        %v690 = vand.u32 %v589, %v670
        %v693 = vand.u32 %v590, %v670
        %695 = vmatpush.bf16.msra.mxu0 %v567
        %696 = vmatpush.bf16.msra.mxu0 %v559
        %697 = vmatpush.bf16.msra.mxu0 %v551
        %698 = vmatpush.bf16.msra.mxu0 %v543
        %699 = vmatpush.bf16.msra.mxu0 %v535
        %700 = vmatpush.bf16.msra.mxu0 %v527
        %701 = vmatpush.bf16.msra.mxu0 %v519
        %702 = vmatpush.bf16.msra.mxu0 %v511
        %703 = vmatmul.bf16.gmra.mxu0 %v280
        %v704 = vpop.f32.mrf.mxu0
        %v705 = vadd.f32 %v275, %v704
        %v706 = vpop.f32.mrf.mxu0
        %707 = vdwg.mxu0
        %708 = vmatpush.bf16.msra.mxu0 0
        %709 = vmatpush.bf16.msra.mxu0 0
        %710 = vmatpush.bf16.msra.mxu0 0
        %711 = vmatpush.bf16.msra.mxu0 0
        %712 = vmatpush.bf16.msra.mxu0 0
        %713 = vmatpush.bf16.msra.mxu0 0
        %714 = vmatpush.bf16.msra.mxu0 %v672
        %715 = vmatpush.bf16.msra.mxu0 %v575
        %716 = vmatmul.bf16.gmra.mxu0 %v665
        %v717 = vpop.f32.mrf.mxu0
        %v718 = vadd.f32 %v705, %v717
        %v719 = vpop.f32.mrf.mxu0
        %720 = vdwg.mxu0
        %721 = vmatpush.bf16.msra.mxu0 %v568
        %722 = vmatpush.bf16.msra.mxu0 %v560
        %723 = vmatpush.bf16.msra.mxu0 %v552
        %724 = vmatpush.bf16.msra.mxu0 %v544
        %725 = vmatpush.bf16.msra.mxu0 %v536
        %726 = vmatpush.bf16.msra.mxu0 %v528
        %727 = vmatpush.bf16.msra.mxu0 %v520
        %728 = vmatpush.bf16.msra.mxu0 %v512
        %729 = vmatmul.bf16.gmra.mxu0 %v280
        %v730 = vpop.f32.mrf.mxu0
        %v731 = vadd.f32 %v275, %v730
        %v732 = vpop.f32.mrf.mxu0
        %733 = vdwg.mxu0
        %734 = vmatpush.bf16.msra.mxu0 0
        %735 = vmatpush.bf16.msra.mxu0 0
        %736 = vmatpush.bf16.msra.mxu0 0
        %737 = vmatpush.bf16.msra.mxu0 0
        %738 = vmatpush.bf16.msra.mxu0 0
        %739 = vmatpush.bf16.msra.mxu0 0
        %740 = vmatpush.bf16.msra.mxu0 %v675
        %741 = vmatpush.bf16.msra.mxu0 %v576
        %742 = vmatmul.bf16.gmra.mxu0 %v665
        %v743 = vpop.f32.mrf.mxu0
        %v744 = vadd.f32 %v731, %v743
        %v745 = vpop.f32.mrf.mxu0
        %746 = vdwg.mxu0
        %747 = vmatpush.bf16.msra.mxu0 %v569
        %748 = vmatpush.bf16.msra.mxu0 %v561
        %749 = vmatpush.bf16.msra.mxu0 %v553
        %750 = vmatpush.bf16.msra.mxu0 %v545
        %751 = vmatpush.bf16.msra.mxu0 %v537
        %752 = vmatpush.bf16.msra.mxu0 %v529
        %753 = vmatpush.bf16.msra.mxu0 %v521
        %754 = vmatpush.bf16.msra.mxu0 %v513
        %755 = vmatmul.bf16.gmra.mxu0 %v280
        %v756 = vpop.f32.mrf.mxu0
        %v757 = vadd.f32 %v275, %v756
        %v758 = vpop.f32.mrf.mxu0
        %759 = vdwg.mxu0
        %760 = vmatpush.bf16.msra.mxu0 0
        %761 = vmatpush.bf16.msra.mxu0 0
        %762 = vmatpush.bf16.msra.mxu0 0
        %763 = vmatpush.bf16.msra.mxu0 0
        %764 = vmatpush.bf16.msra.mxu0 0
        %765 = vmatpush.bf16.msra.mxu0 0
        %766 = vmatpush.bf16.msra.mxu0 %v678
        %767 = vmatpush.bf16.msra.mxu0 %v577
        %768 = vmatmul.bf16.gmra.mxu0 %v665
        %v769 = vpop.f32.mrf.mxu0
        %v770 = vadd.f32 %v757, %v769
        %v771 = vpop.f32.mrf.mxu0
        %772 = vdwg.mxu0
        %773 = vmatpush.bf16.msra.mxu0 %v570
        %774 = vmatpush.bf16.msra.mxu0 %v562
        %775 = vmatpush.bf16.msra.mxu0 %v554
        %776 = vmatpush.bf16.msra.mxu0 %v546
        %777 = vmatpush.bf16.msra.mxu0 %v538
        %778 = vmatpush.bf16.msra.mxu0 %v530
        %779 = vmatpush.bf16.msra.mxu0 %v522
        %780 = vmatpush.bf16.msra.mxu0 %v514
        %781 = vmatmul.bf16.gmra.mxu0 %v280
        %v782 = vpop.f32.mrf.mxu0
        %v783 = vadd.f32 %v275, %v782
        %v784 = vpop.f32.mrf.mxu0
        %785 = vdwg.mxu0
        %786 = vmatpush.bf16.msra.mxu0 0
        %787 = vmatpush.bf16.msra.mxu0 0
        %788 = vmatpush.bf16.msra.mxu0 0
        %789 = vmatpush.bf16.msra.mxu0 0
        %790 = vmatpush.bf16.msra.mxu0 0
        %791 = vmatpush.bf16.msra.mxu0 0
        %792 = vmatpush.bf16.msra.mxu0 %v681
        %793 = vmatpush.bf16.msra.mxu0 %v578
        %794 = vmatmul.bf16.gmra.mxu0 %v665
        %v795 = vpop.f32.mrf.mxu0
        %v796 = vadd.f32 %v783, %v795
        %v797 = vpop.f32.mrf.mxu0
        %798 = vdwg.mxu0
        %799 = vmatpush.bf16.msra.mxu0 %v571
        %800 = vmatpush.bf16.msra.mxu0 %v563
        %801 = vmatpush.bf16.msra.mxu0 %v555
        %802 = vmatpush.bf16.msra.mxu0 %v547
        %803 = vmatpush.bf16.msra.mxu0 %v539
        %804 = vmatpush.bf16.msra.mxu0 %v531
        %805 = vmatpush.bf16.msra.mxu0 %v523
        %806 = vmatpush.bf16.msra.mxu0 %v515
        %807 = vmatmul.bf16.gmra.mxu0 %v280
        %v808 = vpop.f32.mrf.mxu0
        %v809 = vadd.f32 %v275, %v808
        %v810 = vpop.f32.mrf.mxu0
        %811 = vdwg.mxu0
        %812 = vmatpush.bf16.msra.mxu0 0
        %813 = vmatpush.bf16.msra.mxu0 0
        %814 = vmatpush.bf16.msra.mxu0 0
        %815 = vmatpush.bf16.msra.mxu0 0
        %816 = vmatpush.bf16.msra.mxu0 0
        %817 = vmatpush.bf16.msra.mxu0 0
        %818 = vmatpush.bf16.msra.mxu0 %v684
        %819 = vmatpush.bf16.msra.mxu0 %v579
        %820 = vmatmul.bf16.gmra.mxu0 %v665
        %v821 = vpop.f32.mrf.mxu0
        %v822 = vadd.f32 %v809, %v821
        %v823 = vpop.f32.mrf.mxu0
        %824 = vdwg.mxu0
        %825 = vmatpush.bf16.msra.mxu0 %v572
        %826 = vmatpush.bf16.msra.mxu0 %v564
        %827 = vmatpush.bf16.msra.mxu0 %v556
        %828 = vmatpush.bf16.msra.mxu0 %v548
        %829 = vmatpush.bf16.msra.mxu0 %v540
        %830 = vmatpush.bf16.msra.mxu0 %v532
        %831 = vmatpush.bf16.msra.mxu0 %v524
        %832 = vmatpush.bf16.msra.mxu0 %v516
        %833 = vmatmul.bf16.gmra.mxu0 %v280
        %v834 = vpop.f32.mrf.mxu0
        %v835 = vadd.f32 %v275, %v834
        %v836 = vpop.f32.mrf.mxu0
        %837 = vdwg.mxu0
        %838 = vmatpush.bf16.msra.mxu0 0
        %839 = vmatpush.bf16.msra.mxu0 0
        %840 = vmatpush.bf16.msra.mxu0 0
        %841 = vmatpush.bf16.msra.mxu0 0
        %842 = vmatpush.bf16.msra.mxu0 0
        %843 = vmatpush.bf16.msra.mxu0 0
        %844 = vmatpush.bf16.msra.mxu0 %v687
        %845 = vmatpush.bf16.msra.mxu0 %v580
        %846 = vmatmul.bf16.gmra.mxu0 %v665
        %v847 = vpop.f32.mrf.mxu0
        %v848 = vadd.f32 %v835, %v847
        %v849 = vpop.f32.mrf.mxu0
        %850 = vdwg.mxu0
        %851 = vmatpush.bf16.msra.mxu0 %v573
        %852 = vmatpush.bf16.msra.mxu0 %v565
        %853 = vmatpush.bf16.msra.mxu0 %v557
        %854 = vmatpush.bf16.msra.mxu0 %v549
        %855 = vmatpush.bf16.msra.mxu0 %v541
        %856 = vmatpush.bf16.msra.mxu0 %v533
        %857 = vmatpush.bf16.msra.mxu0 %v525
        %858 = vmatpush.bf16.msra.mxu0 %v517
        %859 = vmatmul.bf16.gmra.mxu0 %v280
        %v860 = vpop.f32.mrf.mxu0
        %v861 = vadd.f32 %v275, %v860
        %v862 = vpop.f32.mrf.mxu0
        %863 = vdwg.mxu0
        %864 = vmatpush.bf16.msra.mxu0 0
        %865 = vmatpush.bf16.msra.mxu0 0
        %866 = vmatpush.bf16.msra.mxu0 0
        %867 = vmatpush.bf16.msra.mxu0 0
        %868 = vmatpush.bf16.msra.mxu0 0
        %869 = vmatpush.bf16.msra.mxu0 0
        %870 = vmatpush.bf16.msra.mxu0 %v690
        %871 = vmatpush.bf16.msra.mxu0 %v581
        %872 = vmatmul.bf16.gmra.mxu0 %v665
        %v873 = vpop.f32.mrf.mxu0
        %v874 = vadd.f32 %v861, %v873
        %v875 = vpop.f32.mrf.mxu0
        %876 = vdwg.mxu0
        %877 = vmatpush.bf16.msra.mxu0 %v574
        %878 = vmatpush.bf16.msra.mxu0 %v566
        %879 = vmatpush.bf16.msra.mxu0 %v558
        %880 = vmatpush.bf16.msra.mxu0 %v550
        %881 = vmatpush.bf16.msra.mxu0 %v542
        %882 = vmatpush.bf16.msra.mxu0 %v534
        %883 = vmatpush.bf16.msra.mxu0 %v526
        %884 = vmatpush.bf16.msra.mxu0 %v518
        %885 = vmatmul.bf16.gmra.mxu0 %v280
        %v886 = vpop.f32.mrf.mxu0
        %v887 = vadd.f32 %v275, %v886
        %v888 = vpop.f32.mrf.mxu0
        %889 = vdwg.mxu0
        %890 = vmatpush.bf16.msra.mxu0 0
        %891 = vmatpush.bf16.msra.mxu0 0
        %892 = vmatpush.bf16.msra.mxu0 0
        %893 = vmatpush.bf16.msra.mxu0 0
        %894 = vmatpush.bf16.msra.mxu0 0
        %895 = vmatpush.bf16.msra.mxu0 0
        %896 = vmatpush.bf16.msra.mxu0 %v693
        %897 = vmatpush.bf16.msra.mxu0 %v582
        %898 = vmatmul.bf16.gmra.mxu0 %v665
        %v899 = vpop.f32.mrf.mxu0
        %v900 = vadd.f32 %v887, %v899
        %v901 = vpop.f32.mrf.mxu0
        %902 = vdwg.mxu0
        %v903 = vmax.f32 %v718, 0.0
        %v904 = vmax.f32 %v744, 0.0
        %v905 = vmax.f32 %v770, 0.0
        %v906 = vmax.f32 %v796, 0.0
        %v907 = vmax.f32 %v822, 0.0
        %v908 = vmax.f32 %v848, 0.0
        %v909 = vmax.f32 %v874, 0.0
        %v910 = vmax.f32 %v900, 0.0
        %v911 = vpack.c.bf16 %v904, %v903
        %v912 = vpack.c.bf16 %v906, %v905
        %v913 = vpack.c.bf16 %v908, %v907
        %v914 = vpack.c.bf16 %v910, %v909
        %915 = vst [vmem:[%s190] sm:$0xff] %v911
        %916 = vst [vmem:[%s190 + $0x8] sm:$0xff] %v912
        %917 = vst [vmem:[%s190 + $0x10] sm:$0xff] %v913
        %918 = vst [vmem:[%s190 + $0x18] sm:$0xff] %v914
        %s919 = sand.u32 %s96, 1
        %s920 = scalar_lea.sflag [#allocation4], %s919
        %s921 = sand.u32 %s96, 1
        %s922 = smul.addr %s921, 32
        %s923 = scalar_lea.vmem [#allocation5], %s922
        // Predicated region
        $region37: #{tpu_custom_call.1} parent=31 // pred_check
          %p924 = pneg %p106
        $region38: #{tpu_custom_call.1} parent=31 // pred_check_branch
          %926 = sbr.rel (%p924) target = $region40
        $region39: #{tpu_custom_call.1} parent=31 // pred_region
          %s927 = smul.u32 8, %s20
          %929 = vsyncadd %s920, 0
          %s930 = smul.addr %s927, 4
          %s931 = scalar_lea.hbm %s3, %s930
          %s933 = sshll.u32 %s923, 4
          %s934 = int_to_ptr.vmem [resolvable:$true] %s933
          %s935 = sshll.u32 %s931, 4
          %s936 = int_to_ptr.hbm [resolvable:$true] %s935
          %938 = dma.vmem_to_hbm [thread:$0]  %s934, 512, %s936, %s920
        $region40: #{tpu_custom_call.1} parent=31 // pred_fallthru
          _
      $region32: #{tpu_custom_call.1} parent=5 // pred_fallthru
        _
      %p939 = scmp.le.s32.totalorder 2, %s15
      // Predicated region
      $region41: #{tpu_custom_call.1} parent=5 // pred_check
        %p940 = pneg %p939
      $region42: #{tpu_custom_call.1} parent=5 // pred_check_branch
        %942 = sbr.rel (%p940) target = $region44
      $region43: #{tpu_custom_call.1} parent=5 // pred_region
        %s943 = ssub.s32 %s15, 2
        // Predicated region
        $region45: #{tpu_custom_call.1} parent=43 // pred_check
          %p944 = pneg %p112
        $region46: #{tpu_custom_call.1} parent=43 // pred_check_branch
          %946 = sbr.rel (%p944) target = $region48
        $region47: #{tpu_custom_call.1} parent=43 // pred_region
          %s947 = sand.u32 %s97, 1
          %s948 = scalar_lea.sflag [#allocation4], %s947
          %s949 = sand.u32 %s97, 1
          %s950 = smul.addr %s949, 32
          %s951 = scalar_lea.vmem [#allocation5], %s950
          %953 = dma.done %s948, 512
        $region48: #{tpu_custom_call.1} parent=43 // pred_fallthru
          _
      $region44: #{tpu_custom_call.1} parent=5 // pred_fallthru
        _
    $region6: #{tpu_custom_call.1} parent=1 // loop_footer
      %s19 = sadd.s32 1, %s15
    $region7: #{tpu_custom_call.1} parent=1 // loop_footer_branch
      %14 = sbr.rel target = $region3
    $region8: #{tpu_custom_call.1} parent=1 // loop_exit
      _
    %954 = vsyncpa [#allocation3], 1
    %s955 = scalar_lea.sflag [#allocation3], 1
    %956 = vsyncpa %s955, 1
    %957 = vsyncpa [#allocation4], 1
    %s958 = scalar_lea.sflag [#allocation4], 1
    %959 = vsyncpa %s958, 1

</llo_original>
